<compile_context>
chip_gen: v7x
topology: tpu7x:2x2x1
jax: 0.10.0
libtpu: 0.0.40
codegen_flags: <defaults>
</compile_context>

<pallas_src>
import functools

import jax
import jax.numpy as jnp
from jax.experimental import pallas as pl
from jax.experimental.pallas import tpu as pltpu


# ----------------------------- fused Pallas kernel --------------------------

def _fused_forward_kernel(*refs, num_layers, hidden_size):
    """Fused multi-layer LSTM step (seq_len == 1) + Linear(hidden, 1) head.

    refs layout (inputs..., outputs...):
      [0] x            (B, input_len)
      [1] h_in         (L, B, H)
      [2] c_in         (L, B, H)
      [3 .. 3+L)       W_ih^T per layer   (in_feats_l, 4H)
      [3+L .. 3+2L)    W_hh^T per layer   (H, 4H)
      [3+2L .. 3+3L)   bias per layer     (1, 4H)   (= b_ih + b_hh)
      [3+3L]           fc weight row      (1, H)
      [3+3L+1]         fc bias            (1, 1)
      [3+3L+2]         pred out           (B, 1)
      [3+3L+3]         h out              (L, B, H)
      [3+3L+4]         c out              (L, B, H)
    """
    L, H = num_layers, hidden_size
    x_ref = refs[0]
    h_in_ref = refs[1]
    c_in_ref = refs[2]
    wih_refs = refs[3:3 + L]
    whh_refs = refs[3 + L:3 + 2 * L]
    b_refs = refs[3 + 2 * L:3 + 3 * L]
    fcw_ref = refs[3 + 3 * L]
    fcb_ref = refs[3 + 3 * L + 1]
    pred_ref = refs[3 + 3 * L + 2]
    h_out_ref = refs[3 + 3 * L + 3]
    c_out_ref = refs[3 + 3 * L + 4]

    layer_in = x_ref[...]                     # (B, in_feats) f32
    for l in range(L):                        # static unroll over layers
        h_prev = h_in_ref[l]                  # (B, H)
        c_prev = c_in_ref[l]                  # (B, H)

        # gates: (B, 4H) = x @ W_ih^T + h @ W_hh^T + (b_ih + b_hh)
        gates = (
            jnp.dot(layer_in, wih_refs[l][...],
                    preferred_element_type=jnp.float32)
            + jnp.dot(h_prev, whh_refs[l][...],
                      preferred_element_type=jnp.float32)
            + b_refs[l][...]
        )

        # Two full-width EUP passes + lane-mask select (g-block gets tanh,
        # i/f/o blocks get sigmoid), then slice the activated gates.
        col = jax.lax.broadcasted_iota(jnp.int32, gates.shape, 1)
        is_g = (col >= 2 * H) & (col < 3 * H)
        act = jnp.where(is_g, jnp.tanh(gates), jax.nn.sigmoid(gates))

        i_g = act[:, 0 * H:1 * H]
        f_g = act[:, 1 * H:2 * H]
        g_g = act[:, 2 * H:3 * H]
        o_g = act[:, 3 * H:4 * H]

        c_new = f_g * c_prev + i_g * g_g
        h_new = o_g * jnp.tanh(c_new)

        # write state in place into the stacked (L, B, H) outputs
        h_out_ref[l] = h_new
        c_out_ref[l] = c_new
        layer_in = h_new   # (dropout between layers skipped: eval semantics)

    # fc head as a VPU reduction: (B, H) * (1, H) summed over lanes -> (B, 1)
    pred_ref[...] = (
        jnp.sum(layer_in * fcw_ref[...], axis=-1, keepdims=True) + fcb_ref[...]
    )


# ----------------------------- wrapper ---------------------------------------

def _vmem_spec():
    return pl.BlockSpec(memory_space=pltpu.MemorySpace.VMEM)


def prediction_lstm_forward(params, x, hidden, cell):
    """Mirrors PredictionLSTM.forward:
         x.unsqueeze(1) -> LSTM (seq_len=1) -> fc(out[:, -1, :])
       Returns (prediction (B,1), hidden (L,B,H), cell (L,B,H)).
    """
    x = x.astype(jnp.float32)
    num_layers = hidden.shape[0]
    hidden_size = hidden.shape[-1]
    B = x.shape[0]

    kernel = functools.partial(
        _fused_forward_kernel, num_layers=num_layers, hidden_size=hidden_size
    )
    n_inputs = 3 + 3 * num_layers + 2

    pred, h_new, c_new = pl.pallas_call(
        kernel,
        out_shape=(
            jax.ShapeDtypeStruct((B, 1), jnp.float32),
            jax.ShapeDtypeStruct((num_layers, B, hidden_size), jnp.float32),
            jax.ShapeDtypeStruct((num_layers, B, hidden_size), jnp.float32),
        ),
        in_specs=[_vmem_spec() for _ in range(n_inputs)],
        out_specs=(_vmem_spec(), _vmem_spec(), _vmem_spec()),
        # state buffers are reused in place (decode-loop friendly)
        input_output_aliases={1: 1, 2: 2},
    )(
        x, hidden, cell,
        *params["wih_t"], *params["whh_t"], *params["bias"],
        params["fc_w_row"], params["fc_b"],
    )
    return pred, h_new, c_new


# ----------------------------- pure-JAX reference ---------------------------

def reference_forward(params, x, hidden, cell):
    x = x.astype(jnp.float32)
    num_layers = hidden.shape[0]
    H = hidden.shape[-1]
    layer_in = x
    new_h, new_c = [], []
    for l in range(num_layers):
        gates = (layer_in @ params["wih_t"][l]
                 + hidden[l] @ params["whh_t"][l]
                 + params["bias"][l])
        i = jax.nn.sigmoid(gates[:, 0 * H:1 * H])
        f = jax.nn.sigmoid(gates[:, 1 * H:2 * H])
        g = jnp.tanh(gates[:, 2 * H:3 * H])
        o = jax.nn.sigmoid(gates[:, 3 * H:4 * H])
        c_new = f * cell[l] + i * g
        h_new = o * jnp.tanh(c_new)
        new_h.append(h_new)
        new_c.append(c_new)
        layer_in = h_new
    pred = jnp.sum(layer_in * params["fc_w_row"], axis=-1, keepdims=True) \
        + params["fc_b"]
    return pred, jnp.stack(new_h, 0), jnp.stack(new_c, 0)


# ----------------------------- parameter init -------------------------------

def init_params(key, input_len, hidden_size, num_layers):
    """Deterministic init matching PyTorch shapes: U(-1/sqrt(H), 1/sqrt(H))."""
    bound = 1.0 / jnp.sqrt(jnp.float32(hidden_size))
    wih_t, whh_t, bias = [], [], []
    for layer in range(num_layers):
        in_feats = input_len if layer == 0 else hidden_size
        key, k1, k2, k3, k4 = jax.random.split(key, 5)
        w_ih = jax.random.uniform(k1, (4 * hidden_size, in_feats),
                                  jnp.float32, -bound, bound)
        w_hh = jax.random.uniform(k2, (4 * hidden_size, hidden_size),
                                  jnp.float32, -bound, bound)
        b_ih = jax.random.uniform(k3, (4 * hidden_size,), jnp.float32, -bound, bound)
        b_hh = jax.random.uniform(k4, (4 * hidden_size,), jnp.float32, -bound, bound)
        wih_t.append(w_ih.T)                       # (in_feats, 4H)
        whh_t.append(w_hh.T)                       # (H, 4H)
        bias.append((b_ih + b_hh)[None, :])        # (1, 4H)
    key, k5, k6 = jax.random.split(key, 3)
    fc_w = jax.random.uniform(k5, (1, hidden_size), jnp.float32, -bound, bound)
    fc_b = jax.random.uniform(k6, (1,), jnp.float32, -bound, bound)
    return {
        "wih_t": wih_t,
        "whh_t": whh_t,
        "bias": bias,
        "fc_w_row": fc_w,          # (1, H)  (fc head is a lane reduction)
        "fc_b": fc_b[None, :],     # (1, 1)
    }


# ----------------------------- main ------------------------------------------

if __name__ == "__main__":
    batch = 8          # multiple of 8 -> full sublane occupancy
    input_len = 16
    hidden_size = 32
    num_layers = 2

    key = jax.random.PRNGKey(0)
    key, kx, kh, kc, kp = jax.random.split(key, 5)

    x = jax.random.normal(kx, (batch, input_len), jnp.float32)
    hidden0 = jax.random.normal(kh, (num_layers, batch, hidden_size), jnp.float32)
    cell0 = jax.random.normal(kc, (num_layers, batch, hidden_size), jnp.float32)

    params = init_params(kp, input_len, hidden_size, num_layers)

    fwd = jax.jit(prediction_lstm_forward)
    pred, h_new, c_new = jax.block_until_ready(fwd(params, x, hidden0, cell0))

    # correctness check against pure-JAX reference
    pred_ref, h_ref, c_ref = reference_forward(params, x, hidden0, cell0)
    assert jnp.allclose(pred, pred_ref, atol=1e-5), "prediction mismatch"
    assert jnp.allclose(h_new, h_ref, atol=1e-5), "hidden mismatch"
    assert jnp.allclose(c_new, c_ref, atol=1e-5), "cell mismatch"

    assert pred.shape == (batch, 1)
    assert h_new.shape == (num_layers, batch, hidden_size)
    assert c_new.shape == (num_layers, batch, hidden_size)

    print("KERNEL_OK")
</pallas_src>

<mosaic_0001>
module attributes {stable_mosaic.version = 11 : i64} {
  func.func @_fused_forward_kernel(%arg0: memref<8x16xf32, #tpu.memory_space<vmem>>, %arg1: memref<2x8x32xf32, #tpu.memory_space<vmem>>, %arg2: memref<2x8x32xf32, #tpu.memory_space<vmem>>, %arg3: memref<16x128xf32, #tpu.memory_space<vmem>>, %arg4: memref<32x128xf32, #tpu.memory_space<vmem>>, %arg5: memref<32x128xf32, #tpu.memory_space<vmem>>, %arg6: memref<32x128xf32, #tpu.memory_space<vmem>>, %arg7: memref<1x128xf32, #tpu.memory_space<vmem>>, %arg8: memref<1x128xf32, #tpu.memory_space<vmem>>, %arg9: memref<1x32xf32, #tpu.memory_space<vmem>>, %arg10: memref<1x1xf32, #tpu.memory_space<vmem>>, %arg11: memref<8x1xf32, #tpu.memory_space<vmem>>, %arg12: memref<2x8x32xf32, #tpu.memory_space<vmem>>, %arg13: memref<2x8x32xf32, #tpu.memory_space<vmem>>) attributes {dimension_semantics = [], scalar_prefetch = 0 : i64, scratch_operands = 0 : i64, tpu.core_type = #tpu.core_type<tc>} {
    %c0 = arith.constant 0 : index
    %c0_0 = arith.constant 0 : index
    %0 = vector.load %arg0[%c0, %c0_0] : memref<8x16xf32, #tpu.memory_space<vmem>>, vector<8x16xf32>
    %c0_1 = arith.constant 0 : index
    %c0_2 = arith.constant 0 : index
    %c0_3 = arith.constant 0 : index
    %1 = vector.load %arg1[%c0_1, %c0_2, %c0_3] : memref<2x8x32xf32, #tpu.memory_space<vmem>>, vector<1x8x32xf32>
    %2 = vector.shape_cast %1 : vector<1x8x32xf32> to vector<8x32xf32>
    %c0_4 = arith.constant 0 : index
    %c0_5 = arith.constant 0 : index
    %c0_6 = arith.constant 0 : index
    %3 = vector.load %arg2[%c0_4, %c0_5, %c0_6] : memref<2x8x32xf32, #tpu.memory_space<vmem>>, vector<1x8x32xf32>
    %4 = vector.shape_cast %3 : vector<1x8x32xf32> to vector<8x32xf32>
    %c0_7 = arith.constant 0 : index
    %c0_8 = arith.constant 0 : index
    %5 = vector.load %arg3[%c0_7, %c0_8] : memref<16x128xf32, #tpu.memory_space<vmem>>, vector<16x128xf32>
    %cst = arith.constant dense<0.000000e+00> : vector<8x128xf32>
    %6 = tpu.matmul %0, %5, %cst {dimension_numbers = #tpu.dot_dimension_numbers<[1], [0], [0], [1], [0, 0, 1, 1], [], []>} : vector<8x16xf32>, vector<16x128xf32>, vector<8x128xf32> -> vector<8x128xf32>
    %c0_9 = arith.constant 0 : index
    %c0_10 = arith.constant 0 : index
    %7 = vector.load %arg5[%c0_9, %c0_10] : memref<32x128xf32, #tpu.memory_space<vmem>>, vector<32x128xf32>
    %cst_11 = arith.constant dense<0.000000e+00> : vector<8x128xf32>
    %8 = tpu.matmul %2, %7, %cst_11 {dimension_numbers = #tpu.dot_dimension_numbers<[1], [0], [0], [1], [0, 0, 1, 1], [], []>} : vector<8x32xf32>, vector<32x128xf32>, vector<8x128xf32> -> vector<8x128xf32>
    %9 = arith.addf %6, %8 : vector<8x128xf32>
    %c0_12 = arith.constant 0 : index
    %c0_13 = arith.constant 0 : index
    %10 = vector.load %arg7[%c0_12, %c0_13] : memref<1x128xf32, #tpu.memory_space<vmem>>, vector<1x128xf32>
    %11 = vector.broadcast %10 : vector<1x128xf32> to vector<8x128xf32>
    %12 = arith.addf %9, %11 : vector<8x128xf32>
    %13 = tpu.iota {dimensions = array<i32: 1>} : vector<8x128xi32>
    %c64_i32 = arith.constant 64 : i32
    %14 = vector.broadcast %c64_i32 : i32 to vector<8x128xi32>
    %15 = arith.cmpi sge, %13, %14 : vector<8x128xi32>
    %c96_i32 = arith.constant 96 : i32
    %16 = vector.broadcast %c96_i32 : i32 to vector<8x128xi32>
    %17 = arith.cmpi slt, %13, %16 : vector<8x128xi32>
    %18 = arith.andi %15, %17 : vector<8x128xi1>
    %19 = math.tanh %12 : vector<8x128xf32>
    %20 = arith.negf %12 : vector<8x128xf32>
    %21 = math.exp %20 : vector<8x128xf32>
    %cst_14 = arith.constant 1.000000e+00 : f32
    %22 = vector.broadcast %cst_14 : f32 to vector<8x128xf32>
    %23 = arith.addf %22, %21 : vector<8x128xf32>
    %24 = arith.divf %22, %23 : vector<8x128xf32>
    %25 = arith.select %18, %19, %24 : vector<8x128xi1>, vector<8x128xf32>
    %26 = vector.extract_strided_slice %25 {offsets = [0, 0], sizes = [8, 32], strides = [1, 1]} : vector<8x128xf32> to vector<8x32xf32>
    %27 = vector.extract_strided_slice %25 {offsets = [0, 32], sizes = [8, 32], strides = [1, 1]} : vector<8x128xf32> to vector<8x32xf32>
    %28 = vector.extract_strided_slice %25 {offsets = [0, 64], sizes = [8, 32], strides = [1, 1]} : vector<8x128xf32> to vector<8x32xf32>
    %29 = vector.extract_strided_slice %25 {offsets = [0, 96], sizes = [8, 32], strides = [1, 1]} : vector<8x128xf32> to vector<8x32xf32>
    %30 = arith.mulf %27, %4 : vector<8x32xf32>
    %31 = arith.mulf %26, %28 : vector<8x32xf32>
    %32 = arith.addf %30, %31 : vector<8x32xf32>
    %33 = math.tanh %32 : vector<8x32xf32>
    %34 = arith.mulf %29, %33 : vector<8x32xf32>
    %c0_15 = arith.constant 0 : index
    %c0_16 = arith.constant 0 : index
    %c0_17 = arith.constant 0 : index
    %35 = vector.load %arg12[%c0_15, %c0_16, %c0_17] : memref<2x8x32xf32, #tpu.memory_space<vmem>>, vector<1x8x32xf32>
    %36 = vector.shape_cast %35 : vector<1x8x32xf32> to vector<8x32xf32>
    %37 = vector.shape_cast %34 : vector<8x32xf32> to vector<1x8x32xf32>
    tpu.vector_store %arg12[%c0_15, %c0_16, %c0_17], %37 {strides = array<i32>} : memref<2x8x32xf32, #tpu.memory_space<vmem>>, vector<1x8x32xf32>,
    %c0_18 = arith.constant 0 : index
    %c0_19 = arith.constant 0 : index
    %c0_20 = arith.constant 0 : index
    %38 = vector.load %arg13[%c0_18, %c0_19, %c0_20] : memref<2x8x32xf32, #tpu.memory_space<vmem>>, vector<1x8x32xf32>
    %39 = vector.shape_cast %38 : vector<1x8x32xf32> to vector<8x32xf32>
    %40 = vector.shape_cast %32 : vector<8x32xf32> to vector<1x8x32xf32>
    tpu.vector_store %arg13[%c0_18, %c0_19, %c0_20], %40 {strides = array<i32>} : memref<2x8x32xf32, #tpu.memory_space<vmem>>, vector<1x8x32xf32>,
    %c1 = arith.constant 1 : index
    %c0_21 = arith.constant 0 : index
    %c0_22 = arith.constant 0 : index
    %41 = vector.load %arg1[%c1, %c0_21, %c0_22] : memref<2x8x32xf32, #tpu.memory_space<vmem>>, vector<1x8x32xf32>
    %42 = vector.shape_cast %41 : vector<1x8x32xf32> to vector<8x32xf32>
    %c1_23 = arith.constant 1 : index
    %c0_24 = arith.constant 0 : index
    %c0_25 = arith.constant 0 : index
    %43 = vector.load %arg2[%c1_23, %c0_24, %c0_25] : memref<2x8x32xf32, #tpu.memory_space<vmem>>, vector<1x8x32xf32>
    %44 = vector.shape_cast %43 : vector<1x8x32xf32> to vector<8x32xf32>
    %c0_26 = arith.constant 0 : index
    %c0_27 = arith.constant 0 : index
    %45 = vector.load %arg4[%c0_26, %c0_27] : memref<32x128xf32, #tpu.memory_space<vmem>>, vector<32x128xf32>
    %cst_28 = arith.constant dense<0.000000e+00> : vector<8x128xf32>
    %46 = tpu.matmul %34, %45, %cst_28 {dimension_numbers = #tpu.dot_dimension_numbers<[1], [0], [0], [1], [0, 0, 1, 1], [], []>} : vector<8x32xf32>, vector<32x128xf32>, vector<8x128xf32> -> vector<8x128xf32>
    %c0_29 = arith.constant 0 : index
    %c0_30 = arith.constant 0 : index
    %47 = vector.load %arg6[%c0_29, %c0_30] : memref<32x128xf32, #tpu.memory_space<vmem>>, vector<32x128xf32>
    %cst_31 = arith.constant dense<0.000000e+00> : vector<8x128xf32>
    %48 = tpu.matmul %42, %47, %cst_31 {dimension_numbers = #tpu.dot_dimension_numbers<[1], [0], [0], [1], [0, 0, 1, 1], [], []>} : vector<8x32xf32>, vector<32x128xf32>, vector<8x128xf32> -> vector<8x128xf32>
    %49 = arith.addf %46, %48 : vector<8x128xf32>
    %c0_32 = arith.constant 0 : index
    %c0_33 = arith.constant 0 : index
    %50 = vector.load %arg8[%c0_32, %c0_33] : memref<1x128xf32, #tpu.memory_space<vmem>>, vector<1x128xf32>
    %51 = vector.broadcast %50 : vector<1x128xf32> to vector<8x128xf32>
    %52 = arith.addf %49, %51 : vector<8x128xf32>
    %53 = tpu.iota {dimensions = array<i32: 1>} : vector<8x128xi32>
    %c64_i32_34 = arith.constant 64 : i32
    %54 = vector.broadcast %c64_i32_34 : i32 to vector<8x128xi32>
    %55 = arith.cmpi sge, %53, %54 : vector<8x128xi32>
    %c96_i32_35 = arith.constant 96 : i32
    %56 = vector.broadcast %c96_i32_35 : i32 to vector<8x128xi32>
    %57 = arith.cmpi slt, %53, %56 : vector<8x128xi32>
    %58 = arith.andi %55, %57 : vector<8x128xi1>
    %59 = math.tanh %52 : vector<8x128xf32>
    %60 = arith.negf %52 : vector<8x128xf32>
    %61 = math.exp %60 : vector<8x128xf32>
    %cst_36 = arith.constant 1.000000e+00 : f32
    %62 = vector.broadcast %cst_36 : f32 to vector<8x128xf32>
    %63 = arith.addf %62, %61 : vector<8x128xf32>
    %64 = arith.divf %62, %63 : vector<8x128xf32>
    %65 = arith.select %58, %59, %64 : vector<8x128xi1>, vector<8x128xf32>
    %66 = vector.extract_strided_slice %65 {offsets = [0, 0], sizes = [8, 32], strides = [1, 1]} : vector<8x128xf32> to vector<8x32xf32>
    %67 = vector.extract_strided_slice %65 {offsets = [0, 32], sizes = [8, 32], strides = [1, 1]} : vector<8x128xf32> to vector<8x32xf32>
    %68 = vector.extract_strided_slice %65 {offsets = [0, 64], sizes = [8, 32], strides = [1, 1]} : vector<8x128xf32> to vector<8x32xf32>
    %69 = vector.extract_strided_slice %65 {offsets = [0, 96], sizes = [8, 32], strides = [1, 1]} : vector<8x128xf32> to vector<8x32xf32>
    %70 = arith.mulf %67, %44 : vector<8x32xf32>
    %71 = arith.mulf %66, %68 : vector<8x32xf32>
    %72 = arith.addf %70, %71 : vector<8x32xf32>
    %73 = math.tanh %72 : vector<8x32xf32>
    %74 = arith.mulf %69, %73 : vector<8x32xf32>
    %c1_37 = arith.constant 1 : index
    %c0_38 = arith.constant 0 : index
    %c0_39 = arith.constant 0 : index
    %75 = vector.load %arg12[%c1_37, %c0_38, %c0_39] : memref<2x8x32xf32, #tpu.memory_space<vmem>>, vector<1x8x32xf32>
    %76 = vector.shape_cast %75 : vector<1x8x32xf32> to vector<8x32xf32>
    %77 = vector.shape_cast %74 : vector<8x32xf32> to vector<1x8x32xf32>
    tpu.vector_store %arg12[%c1_37, %c0_38, %c0_39], %77 {strides = array<i32>} : memref<2x8x32xf32, #tpu.memory_space<vmem>>, vector<1x8x32xf32>,
    %c1_40 = arith.constant 1 : index
    %c0_41 = arith.constant 0 : index
    %c0_42 = arith.constant 0 : index
    %78 = vector.load %arg13[%c1_40, %c0_41, %c0_42] : memref<2x8x32xf32, #tpu.memory_space<vmem>>, vector<1x8x32xf32>
    %79 = vector.shape_cast %78 : vector<1x8x32xf32> to vector<8x32xf32>
    %80 = vector.shape_cast %72 : vector<8x32xf32> to vector<1x8x32xf32>
    tpu.vector_store %arg13[%c1_40, %c0_41, %c0_42], %80 {strides = array<i32>} : memref<2x8x32xf32, #tpu.memory_space<vmem>>, vector<1x8x32xf32>,
    %c0_43 = arith.constant 0 : index
    %c0_44 = arith.constant 0 : index
    %81 = vector.load %arg9[%c0_43, %c0_44] : memref<1x32xf32, #tpu.memory_space<vmem>>, vector<1x32xf32>
    %82 = vector.broadcast %81 : vector<1x32xf32> to vector<8x32xf32>
    %83 = arith.mulf %74, %82 : vector<8x32xf32>
    %cst_45 = arith.constant dense<0.000000e+00> : vector<8xf32>
    %84 = vector.multi_reduction <add>, %83, %cst_45 [1] : vector<8x32xf32> to vector<8xf32>
    %85 = vector.shape_cast %84 : vector<8xf32> to vector<8x1xf32>
    %c0_46 = arith.constant 0 : index
    %c0_47 = arith.constant 0 : index
    %86 = vector.load %arg10[%c0_46, %c0_47] : memref<1x1xf32, #tpu.memory_space<vmem>>, vector<1x1xf32>
    %87 = vector.broadcast %86 : vector<1x1xf32> to vector<8x1xf32>
    %88 = arith.addf %85, %87 : vector<8x1xf32>
    %c0_48 = arith.constant 0 : index
    %c0_49 = arith.constant 0 : index
    %89 = vector.load %arg11[%c0_48, %c0_49] : memref<8x1xf32, #tpu.memory_space<vmem>>, vector<8x1xf32>
    tpu.vector_store %arg11[%c0_48, %c0_49], %88 {strides = array<i32>} : memref<8x1xf32, #tpu.memory_space<vmem>>, vector<8x1xf32>,
    return
  }
}

</mosaic_0001>

<llo_original>
// kernel: prediction_lstm_forward.1
$region0: #{prediction_lstm_forward.1}
  #allocation0 [shape = 'u32[]', space=smem, size = 0x4, offset = 0x4, fixed_abs, tag = 'smem constant byte address 0x4 - core index']
  #allocation1 [shape = 'u32[144,128]{1,0:T(1,128)}', space=vmem, size = 0x12000, scoped, tag = 'internal scratch']
  #allocation2 [shape = 'f32[1,1]{1,0:T(1,128)S(1)}', space=vmem, size = 0x200, scoped, tag = 'scoped memory for prediction_lstm_forward.1']
  %s0 = inlined_call_operand.hbm [shape: f32[8,16], index: 0, kind: input, shape index: {}]
  %s1 = inlined_call_operand.vmem [shape: f32[2,8,32], index: 1, kind: input, shape index: {}, may-alias: {1,12}]
  %s2 = inlined_call_operand.vmem [shape: f32[2,8,32], index: 2, kind: input, shape index: {}, may-alias: {2,13}]
  %s3 = inlined_call_operand.vmem [shape: f32[16,128], index: 3, kind: input, shape index: {}]
  %s4 = inlined_call_operand.vmem [shape: f32[32,128], index: 4, kind: input, shape index: {}]
  %s5 = inlined_call_operand.hbm [shape: f32[32,128], index: 5, kind: input, shape index: {}]
  %s6 = inlined_call_operand.hbm [shape: f32[32,128], index: 6, kind: input, shape index: {}]
  %s7 = inlined_call_operand.vmem [shape: f32[1,128], index: 7, kind: input, shape index: {}]
  %s8 = inlined_call_operand.vmem [shape: f32[1,128], index: 8, kind: input, shape index: {}]
  %s9 = inlined_call_operand.vmem [shape: f32[1,32], index: 9, kind: input, shape index: {}]
  %s10 = inlined_call_operand.<no memory space> [shape: f32[1,1], index: 10, kind: input, shape index: {}]
  %s11 = inlined_call_operand.vmem [shape: f32[8,1], index: 11, kind: output, shape index: {0}]
  %s12 = inlined_call_operand.vmem [shape: f32[2,8,32], index: 12, kind: output, shape index: {1}, may-alias: {1,12}]
  %s13 = inlined_call_operand.vmem [shape: f32[2,8,32], index: 13, kind: output, shape index: {2}, may-alias: {2,13}]
  %14 = xla_tuple %s11, %s12, %s13
  %s15 = sld [smem:[#allocation0]]
  $region82: #{prediction_lstm_forward.1} parent=0
    _
  %s17 = ssub.s32 1, %s15
  %s18 = scalar_select 0, %s17, %s15
  %v19 = vstv %s10
  %20 = vst [vmem:[#allocation2] sm:$0x1] %v19
  $region1: #{prediction_lstm_forward.1} parent=0
    #allocation3 [shape = 'u8[4096]{0}', space=vmem, size = 0x1000, scoped, tag = 'input window, operand 0, single buffered']
    #allocation4 [shape = 's32[1]{0}', space=sflag, size = 0x4, scoped, tag = 'scoped memory for prediction_lstm_forward.1']
    #allocation5 [shape = 'u8[16384]{0}', space=vmem, size = 0x4000, scoped, tag = 'input window, operand 5, single buffered']
    #allocation6 [shape = 's32[1]{0}', space=sflag, size = 0x4, scoped, tag = 'scoped memory for prediction_lstm_forward.1']
    #allocation7 [shape = 'u8[16384]{0}', space=vmem, size = 0x4000, scoped, tag = 'input window, operand 6, single buffered']
    %21 = vsyncpa [#allocation4], 0
    %22 = vsyncpa [#allocation6], 0
    // Predicated region
    $region2: #{prediction_lstm_forward.1} parent=1 // pred_check
      _
    $region3: #{prediction_lstm_forward.1} parent=1 // pred_check_branch
      %24 = sbr.rel (0) target = $region5
    $region4: #{prediction_lstm_forward.1} parent=1 // pred_region
      %s26 = ssub.s32 128, 128
      %27 = vsyncadd [#allocation4], %s26
      %s29 = sshll.u32 [#allocation3], 4
      %s30 = int_to_ptr.vmem [resolvable:$true] %s29
      %32 = dma.hbm_to_vmem [thread:$0]  %s0, 128, %s30, [#allocation4]
    $region5: #{prediction_lstm_forward.1} parent=1 // pred_fallthru
      _
    // Predicated region
    $region6: #{prediction_lstm_forward.1} parent=1 // pred_check
      _
    $region7: #{prediction_lstm_forward.1} parent=1 // pred_check_branch
      %34 = sbr.rel (0) target = $region9
    $region8: #{prediction_lstm_forward.1} parent=1 // pred_region
      _
    $region9: #{prediction_lstm_forward.1} parent=1 // pred_fallthru
      _
    // Predicated region
    $region10: #{prediction_lstm_forward.1} parent=1 // pred_check
      _
    $region11: #{prediction_lstm_forward.1} parent=1 // pred_check_branch
      %36 = sbr.rel (0) target = $region13
    $region12: #{prediction_lstm_forward.1} parent=1 // pred_region
      _
    $region13: #{prediction_lstm_forward.1} parent=1 // pred_fallthru
      _
    // Predicated region
    $region14: #{prediction_lstm_forward.1} parent=1 // pred_check
      _
    $region15: #{prediction_lstm_forward.1} parent=1 // pred_check_branch
      %38 = sbr.rel (0) target = $region17
    $region16: #{prediction_lstm_forward.1} parent=1 // pred_region
      _
    $region17: #{prediction_lstm_forward.1} parent=1 // pred_fallthru
      _
    // Predicated region
    $region18: #{prediction_lstm_forward.1} parent=1 // pred_check
      _
    $region19: #{prediction_lstm_forward.1} parent=1 // pred_check_branch
      %40 = sbr.rel (0) target = $region21
    $region20: #{prediction_lstm_forward.1} parent=1 // pred_region
      _
    $region21: #{prediction_lstm_forward.1} parent=1 // pred_fallthru
      _
    // Predicated region
    $region22: #{prediction_lstm_forward.1} parent=1 // pred_check
      _
    $region23: #{prediction_lstm_forward.1} parent=1 // pred_check_branch
      %42 = sbr.rel (0) target = $region25
    $region24: #{prediction_lstm_forward.1} parent=1 // pred_region
      %s44 = ssub.s32 512, 512
      %45 = vsyncadd [#allocation6], %s44
      %s46 = sshll.u32 [#allocation5], 4
      %s47 = int_to_ptr.vmem [resolvable:$true] %s46
      %52 = dma.hbm_to_vmem [thread:$0]  %s5, 512, %s47, [#allocation6], 128, 128, 8
    $region25: #{prediction_lstm_forward.1} parent=1 // pred_fallthru
      _
    // Predicated region
    $region26: #{prediction_lstm_forward.1} parent=1 // pred_check
      _
    $region27: #{prediction_lstm_forward.1} parent=1 // pred_check_branch
      %54 = sbr.rel (0) target = $region29
    $region28: #{prediction_lstm_forward.1} parent=1 // pred_region
      %s56 = ssub.s32 512, 512
      %57 = vsyncadd [#allocation6], %s56
      %s58 = sshll.u32 [#allocation7], 4
      %s59 = int_to_ptr.vmem [resolvable:$true] %s58
      %64 = dma.hbm_to_vmem [thread:$0]  %s6, 512, %s59, [#allocation6], 128, 128, 8
    $region29: #{prediction_lstm_forward.1} parent=1 // pred_fallthru
      _
    // Predicated region
    $region30: #{prediction_lstm_forward.1} parent=1 // pred_check
      _
    $region31: #{prediction_lstm_forward.1} parent=1 // pred_check_branch
      %66 = sbr.rel (0) target = $region33
    $region32: #{prediction_lstm_forward.1} parent=1 // pred_region
      _
    $region33: #{prediction_lstm_forward.1} parent=1 // pred_fallthru
      _
    // Predicated region
    $region34: #{prediction_lstm_forward.1} parent=1 // pred_check
      _
    $region35: #{prediction_lstm_forward.1} parent=1 // pred_check_branch
      %68 = sbr.rel (0) target = $region37
    $region36: #{prediction_lstm_forward.1} parent=1 // pred_region
      _
    $region37: #{prediction_lstm_forward.1} parent=1 // pred_fallthru
      _
    // Predicated region
    $region38: #{prediction_lstm_forward.1} parent=1 // pred_check
      _
    $region39: #{prediction_lstm_forward.1} parent=1 // pred_check_branch
      %70 = sbr.rel (0) target = $region41
    $region40: #{prediction_lstm_forward.1} parent=1 // pred_region
      _
    $region41: #{prediction_lstm_forward.1} parent=1 // pred_fallthru
      _
    // Predicated region
    $region42: #{prediction_lstm_forward.1} parent=1 // pred_check
      _
    $region43: #{prediction_lstm_forward.1} parent=1 // pred_check_branch
      %72 = sbr.rel (0) target = $region45
    $region44: #{prediction_lstm_forward.1} parent=1 // pred_region
      _
    $region45: #{prediction_lstm_forward.1} parent=1 // pred_fallthru
      _
    // Predicated region
    $region46: #{prediction_lstm_forward.1} parent=1 // pred_check
      _
    $region47: #{prediction_lstm_forward.1} parent=1 // pred_check_branch
      %74 = sbr.rel (0) target = $region49
    $region48: #{prediction_lstm_forward.1} parent=1 // pred_region
      %75 = dma.done [#allocation4], 128
    $region49: #{prediction_lstm_forward.1} parent=1 // pred_fallthru
      _
    // Predicated region
    $region50: #{prediction_lstm_forward.1} parent=1 // pred_check
      _
    $region51: #{prediction_lstm_forward.1} parent=1 // pred_check_branch
      %77 = sbr.rel (0) target = $region53
    $region52: #{prediction_lstm_forward.1} parent=1 // pred_region
      %78 = dma.done [#allocation6], 512
    $region53: #{prediction_lstm_forward.1} parent=1 // pred_fallthru
      _
    // Predicated region
    $region54: #{prediction_lstm_forward.1} parent=1 // pred_check
      _
    $region55: #{prediction_lstm_forward.1} parent=1 // pred_check_branch
      %80 = sbr.rel (0) target = $region57
    $region56: #{prediction_lstm_forward.1} parent=1 // pred_region
      %81 = dma.done [#allocation6], 512
    $region57: #{prediction_lstm_forward.1} parent=1 // pred_fallthru
      _
    %v82 = vld [vmem:[#allocation3] sm:$0xff]
    %v83 = vld [vmem:[%s1] sm:$0xff]
    %v84 = vld [vmem:[%s2] sm:$0xff]
    %v85 = vld [vmem:[%s3] sm:$0xff]
    %v86 = vld [vmem:[%s3 + $0x8] sm:$0xff]
    %v87 = vld [vmem:[#allocation5] sm:$0xff]
    %v88 = vld [vmem:[#allocation5 + $0x8] sm:$0xff]
    %v89 = vld [vmem:[#allocation5 + $0x10] sm:$0xff]
    %v90 = vld [vmem:[#allocation5 + $0x18] sm:$0xff]
    %vm91 = vcmask 261120
    %v93 = vsel %vm91, %v83, 0
    %95 = vmatprep.subr.mxu0 0.0
    %96 = vmatpush1.msra.mxu0 %v87
    %97 = vmatprep.subr.mxu0 0.0
    %98 = vmatpush1.msra.mxu0 %v88
    %99 = vmatprep.subr.mxu0 0.0
    %100 = vmatpush1.msra.mxu0 %v89
    %101 = vmatprep.subr.mxu0 0.0
    %102 = vmatpush1.msra.mxu0 %v90
    %103 = vmatprep.subr.mxu0 0.0
    %104 = vmatpush1.msra.mxu0 0.0
    %105 = vmatprep.subr.mxu0 0.0
    %106 = vmatpush1.msra.mxu0 0.0
    %107 = vmatprep.subr.mxu0 0.0
    %108 = vmatpush1.msra.mxu0 0.0
    %109 = vmatprep.subr.mxu0 0.0
    %110 = vmatpush1.msra.mxu0 0.0
    %111 = vmatprep.subr.mxu0 0.0
    %112 = vmatpush1.msra.mxu0 0.0
    %113 = vmatprep.subr.mxu0 0.0
    %114 = vmatpush1.msra.mxu0 0.0
    %115 = vmatprep.subr.mxu0 0.0
    %116 = vmatpush1.msra.mxu0 0.0
    %117 = vmatprep.subr.mxu0 0.0
    %118 = vmatpush1.msra.mxu0 0.0
    %119 = vmatprep.subr.mxu0 0.0
    %120 = vmatpush1.msra.mxu0 0.0
    %121 = vmatprep.subr.mxu0 0.0
    %122 = vmatpush1.msra.mxu0 0.0
    %123 = vmatprep.subr.mxu0 0.0
    %124 = vmatpush1.msra.mxu0 0.0
    %125 = vmatprep.subr.mxu0 0.0
    %126 = vmatpush1.msra.mxu0 0.0
    %127 = vmatprep.subr.mxu0 0.0
    %128 = vmatpush1.msra.mxu0 0.0
    %129 = vmatprep.subr.mxu0 0.0
    %130 = vmatpush1.msra.mxu0 0.0
    %131 = vmatprep.subr.mxu0 0.0
    %132 = vmatpush1.msra.mxu0 0.0
    %133 = vmatprep.subr.mxu0 0.0
    %134 = vmatpush1.msra.mxu0 0.0
    %135 = vmatprep.subr.mxu0 0.0
    %136 = vmatpush1.msra.mxu0 0.0
    %137 = vmatprep.subr.mxu0 0.0
    %138 = vmatpush1.msra.mxu0 0.0
    %139 = vmatprep.subr.mxu0 0.0
    %140 = vmatpush1.msra.mxu0 0.0
    %141 = vmatprep.subr.mxu0 0.0
    %142 = vmatpush1.msra.mxu0 0.0
    %143 = vmatprep.subr.mxu0 0.0
    %144 = vmatpush1.msra.mxu0 0.0
    %145 = vmatprep.subr.mxu0 0.0
    %146 = vmatpush1.msra.mxu0 0.0
    %147 = vmatprep.subr.mxu0 0.0
    %148 = vmatpush1.msra.mxu0 0.0
    %149 = vmatprep.subr.mxu0 0.0
    %150 = vmatpush1.msra.mxu0 0.0
    %151 = vmatprep.subr.mxu0 0.0
    %152 = vmatpush1.msra.mxu0 0.0
    %153 = vmatprep.subr.mxu0 0.0
    %154 = vmatpush1.msra.mxu0 0.0
    %155 = vmatprep.subr.mxu0 0.0
    %156 = vmatpush1.msra.mxu0 0.0
    %157 = vmatprep.subr.mxu0 0.0
    %158 = vmatpush1.msra.mxu0 0.0
    %159 = vmatprep.mubr.f32.mxu0 0.0
    %160 = vmatmul.mubr.f32.gmra.mrb[0].mxu0 %v93
    %v161 = vpop.f32.mrb[0].mxu0
    %v162 = vadd.f32 0.0, %v161
    %v163 = vpop.f32.mrb[0].mxu0
    %164 = vdwg.mxu0
    %vm165 = vcmask 130048
    %v167 = vsel %vm165, %v82, 0
    %169 = vmatprep.subr.mxu0 0.0
    %170 = vmatpush1.msra.mxu0 %v85
    %171 = vmatprep.subr.mxu0 0.0
    %172 = vmatpush1.msra.mxu0 %v86
    %173 = vmatprep.subr.mxu0 0.0
    %174 = vmatpush1.msra.mxu0 0.0
    %175 = vmatprep.subr.mxu0 0.0
    %176 = vmatpush1.msra.mxu0 0.0
    %177 = vmatprep.subr.mxu0 0.0
    %178 = vmatpush1.msra.mxu0 0.0
    %179 = vmatprep.subr.mxu0 0.0
    %180 = vmatpush1.msra.mxu0 0.0
    %181 = vmatprep.subr.mxu0 0.0
    %182 = vmatpush1.msra.mxu0 0.0
    %183 = vmatprep.subr.mxu0 0.0
    %184 = vmatpush1.msra.mxu0 0.0
    %185 = vmatprep.subr.mxu0 0.0
    %186 = vmatpush1.msra.mxu0 0.0
    %187 = vmatprep.subr.mxu0 0.0
    %188 = vmatpush1.msra.mxu0 0.0
    %189 = vmatprep.subr.mxu0 0.0
    %190 = vmatpush1.msra.mxu0 0.0
    %191 = vmatprep.subr.mxu0 0.0
    %192 = vmatpush1.msra.mxu0 0.0
    %193 = vmatprep.subr.mxu0 0.0
    %194 = vmatpush1.msra.mxu0 0.0
    %195 = vmatprep.subr.mxu0 0.0
    %196 = vmatpush1.msra.mxu0 0.0
    %197 = vmatprep.subr.mxu0 0.0
    %198 = vmatpush1.msra.mxu0 0.0
    %199 = vmatprep.subr.mxu0 0.0
    %200 = vmatpush1.msra.mxu0 0.0
    %201 = vmatprep.subr.mxu0 0.0
    %202 = vmatpush1.msra.mxu0 0.0
    %203 = vmatprep.subr.mxu0 0.0
    %204 = vmatpush1.msra.mxu0 0.0
    %205 = vmatprep.subr.mxu0 0.0
    %206 = vmatpush1.msra.mxu0 0.0
    %207 = vmatprep.subr.mxu0 0.0
    %208 = vmatpush1.msra.mxu0 0.0
    %209 = vmatprep.subr.mxu0 0.0
    %210 = vmatpush1.msra.mxu0 0.0
    %211 = vmatprep.subr.mxu0 0.0
    %212 = vmatpush1.msra.mxu0 0.0
    %213 = vmatprep.subr.mxu0 0.0
    %214 = vmatpush1.msra.mxu0 0.0
    %215 = vmatprep.subr.mxu0 0.0
    %216 = vmatpush1.msra.mxu0 0.0
    %217 = vmatprep.subr.mxu0 0.0
    %218 = vmatpush1.msra.mxu0 0.0
    %219 = vmatprep.subr.mxu0 0.0
    %220 = vmatpush1.msra.mxu0 0.0
    %221 = vmatprep.subr.mxu0 0.0
    %222 = vmatpush1.msra.mxu0 0.0
    %223 = vmatprep.subr.mxu0 0.0
    %224 = vmatpush1.msra.mxu0 0.0
    %225 = vmatprep.subr.mxu0 0.0
    %226 = vmatpush1.msra.mxu0 0.0
    %227 = vmatprep.subr.mxu0 0.0
    %228 = vmatpush1.msra.mxu0 0.0
    %229 = vmatprep.subr.mxu0 0.0
    %230 = vmatpush1.msra.mxu0 0.0
    %231 = vmatprep.subr.mxu0 0.0
    %232 = vmatpush1.msra.mxu0 0.0
    %233 = vmatprep.mubr.f32.mxu0 0.0
    %234 = vmatmul.mubr.f32.gmra.mrb[0].mxu0 %v167
    %v235 = vpop.f32.mrb[0].mxu0
    %v236 = vadd.f32 %v162, %v235
    %v237 = vpop.f32.mrb[0].mxu0
    %238 = vdwg.mxu0
    %v239 = vld [vmem:[%s7] sm:$0x1]
    %v241 = vlaneseq
    %v242 = vshrl.u32 %v241, 7
    %v243 = vsub.s32 0, %v242
    %v244 = vrot.slane %v239, %v243
    %v246 = vadd.f32 %v236, %v244
    %v247 = vlaneseq
    %v248 = vand.u32 %v247, 127
    %vm249 = vcmp.ge.s32.totalorder %v248, 64
    %vm250 = vcmp.lt.s32.totalorder %v248, 96
    %vm251 = vmand %vm249, %vm250
    %v252 = vtanh.pop %v246
    %v253 = vxor.u32 %v246, 2147483648
    %v254 = vmul.f32 %v253, 1.442695
    %v255 = vpow.pop %v254
    %v256 = vadd.f32 %v255, 1.0
    %v257 = vrcp.pop %v256
    %v258 = vmul.f32 1.0, %v257
    %v259 = vsel %vm251, %v252, %v258
    %261 = vrot.lane.b32.xlu0 %v84, 32
    %v262 = vpop.permute.xlu0 %261
    %v264 = vmul.f32 %v259, %v262
    %266 = vrot.lane.b32.xlu0 %v259, 64
    %v267 = vpop.permute.xlu0 %266
    %v269 = vmul.f32 %v259, %v267
    %271 = vrot.lane.b32.xlu0 %v269, 32
    %v272 = vpop.permute.xlu0 %271
    %v274 = vadd.f32 %v264, %v272
    %v275 = vtanh.pop %v274
    %277 = vrot.lane.b32.xlu0 %v275, 64
    %v278 = vpop.permute.xlu0 %277
    %v280 = vmul.f32 %v259, %v278
    %282 = vrot.lane.b32.xlu0 %v280, 32
    %v283 = vpop.permute.xlu0 %282
    %285 = vst.msk [vmem:[%s12] sm:$0xff] %vm91, %v283
    %287 = vrot.lane.b32.xlu0 %v274, 96
    %v288 = vpop.permute.xlu0 %287
    %290 = vst.msk [vmem:[%s13] sm:$0xff] %vm91, %v288
    %s291 = scalar_lea.vmem %s1, 8
    %v292 = vld [vmem:[%s291] sm:$0xff]
    %s293 = scalar_lea.vmem %s2, 8
    %v294 = vld [vmem:[%s293] sm:$0xff]
    %v295 = vld [vmem:[%s4] sm:$0xff]
    %v296 = vld [vmem:[%s4 + $0x8] sm:$0xff]
    %v297 = vld [vmem:[%s4 + $0x10] sm:$0xff]
    %v298 = vld [vmem:[%s4 + $0x18] sm:$0xff]
    %v299 = vld [vmem:[#allocation7] sm:$0xff]
    %v300 = vld [vmem:[#allocation7 + $0x8] sm:$0xff]
    %v301 = vld [vmem:[#allocation7 + $0x10] sm:$0xff]
    %v302 = vld [vmem:[#allocation7 + $0x18] sm:$0xff]
    %v304 = vsel %vm91, %v292, 0
    %306 = vmatprep.subr.mxu0 0.0
    %307 = vmatpush1.msra.mxu0 %v299
    %308 = vmatprep.subr.mxu0 0.0
    %309 = vmatpush1.msra.mxu0 %v300
    %310 = vmatprep.subr.mxu0 0.0
    %311 = vmatpush1.msra.mxu0 %v301
    %312 = vmatprep.subr.mxu0 0.0
    %313 = vmatpush1.msra.mxu0 %v302
    %314 = vmatprep.subr.mxu0 0.0
    %315 = vmatpush1.msra.mxu0 0.0
    %316 = vmatprep.subr.mxu0 0.0
    %317 = vmatpush1.msra.mxu0 0.0
    %318 = vmatprep.subr.mxu0 0.0
    %319 = vmatpush1.msra.mxu0 0.0
    %320 = vmatprep.subr.mxu0 0.0
    %321 = vmatpush1.msra.mxu0 0.0
    %322 = vmatprep.subr.mxu0 0.0
    %323 = vmatpush1.msra.mxu0 0.0
    %324 = vmatprep.subr.mxu0 0.0
    %325 = vmatpush1.msra.mxu0 0.0
    %326 = vmatprep.subr.mxu0 0.0
    %327 = vmatpush1.msra.mxu0 0.0
    %328 = vmatprep.subr.mxu0 0.0
    %329 = vmatpush1.msra.mxu0 0.0
    %330 = vmatprep.subr.mxu0 0.0
    %331 = vmatpush1.msra.mxu0 0.0
    %332 = vmatprep.subr.mxu0 0.0
    %333 = vmatpush1.msra.mxu0 0.0
    %334 = vmatprep.subr.mxu0 0.0
    %335 = vmatpush1.msra.mxu0 0.0
    %336 = vmatprep.subr.mxu0 0.0
    %337 = vmatpush1.msra.mxu0 0.0
    %338 = vmatprep.subr.mxu0 0.0
    %339 = vmatpush1.msra.mxu0 0.0
    %340 = vmatprep.subr.mxu0 0.0
    %341 = vmatpush1.msra.mxu0 0.0
    %342 = vmatprep.subr.mxu0 0.0
    %343 = vmatpush1.msra.mxu0 0.0
    %344 = vmatprep.subr.mxu0 0.0
    %345 = vmatpush1.msra.mxu0 0.0
    %346 = vmatprep.subr.mxu0 0.0
    %347 = vmatpush1.msra.mxu0 0.0
    %348 = vmatprep.subr.mxu0 0.0
    %349 = vmatpush1.msra.mxu0 0.0
    %350 = vmatprep.subr.mxu0 0.0
    %351 = vmatpush1.msra.mxu0 0.0
    %352 = vmatprep.subr.mxu0 0.0
    %353 = vmatpush1.msra.mxu0 0.0
    %354 = vmatprep.subr.mxu0 0.0
    %355 = vmatpush1.msra.mxu0 0.0
    %356 = vmatprep.subr.mxu0 0.0
    %357 = vmatpush1.msra.mxu0 0.0
    %358 = vmatprep.subr.mxu0 0.0
    %359 = vmatpush1.msra.mxu0 0.0
    %360 = vmatprep.subr.mxu0 0.0
    %361 = vmatpush1.msra.mxu0 0.0
    %362 = vmatprep.subr.mxu0 0.0
    %363 = vmatpush1.msra.mxu0 0.0
    %364 = vmatprep.subr.mxu0 0.0
    %365 = vmatpush1.msra.mxu0 0.0
    %366 = vmatprep.subr.mxu0 0.0
    %367 = vmatpush1.msra.mxu0 0.0
    %368 = vmatprep.subr.mxu0 0.0
    %369 = vmatpush1.msra.mxu0 0.0
    %370 = vmatprep.mubr.f32.mxu0 0.0
    %371 = vmatmul.mubr.f32.gmra.mrb[0].mxu0 %v304
    %v372 = vpop.f32.mrb[0].mxu0
    %v373 = vadd.f32 0.0, %v372
    %v374 = vpop.f32.mrb[0].mxu0
    %375 = vdwg.mxu0
    %v376 = vsel %vm91, %v283, 0
    %378 = vmatprep.subr.mxu0 0.0
    %379 = vmatpush1.msra.mxu0 %v295
    %380 = vmatprep.subr.mxu0 0.0
    %381 = vmatpush1.msra.mxu0 %v296
    %382 = vmatprep.subr.mxu0 0.0
    %383 = vmatpush1.msra.mxu0 %v297
    %384 = vmatprep.subr.mxu0 0.0
    %385 = vmatpush1.msra.mxu0 %v298
    %386 = vmatprep.subr.mxu0 0.0
    %387 = vmatpush1.msra.mxu0 0.0
    %388 = vmatprep.subr.mxu0 0.0
    %389 = vmatpush1.msra.mxu0 0.0
    %390 = vmatprep.subr.mxu0 0.0
    %391 = vmatpush1.msra.mxu0 0.0
    %392 = vmatprep.subr.mxu0 0.0
    %393 = vmatpush1.msra.mxu0 0.0
    %394 = vmatprep.subr.mxu0 0.0
    %395 = vmatpush1.msra.mxu0 0.0
    %396 = vmatprep.subr.mxu0 0.0
    %397 = vmatpush1.msra.mxu0 0.0
    %398 = vmatprep.subr.mxu0 0.0
    %399 = vmatpush1.msra.mxu0 0.0
    %400 = vmatprep.subr.mxu0 0.0
    %401 = vmatpush1.msra.mxu0 0.0
    %402 = vmatprep.subr.mxu0 0.0
    %403 = vmatpush1.msra.mxu0 0.0
    %404 = vmatprep.subr.mxu0 0.0
    %405 = vmatpush1.msra.mxu0 0.0
    %406 = vmatprep.subr.mxu0 0.0
    %407 = vmatpush1.msra.mxu0 0.0
    %408 = vmatprep.subr.mxu0 0.0
    %409 = vmatpush1.msra.mxu0 0.0
    %410 = vmatprep.subr.mxu0 0.0
    %411 = vmatpush1.msra.mxu0 0.0
    %412 = vmatprep.subr.mxu0 0.0
    %413 = vmatpush1.msra.mxu0 0.0
    %414 = vmatprep.subr.mxu0 0.0
    %415 = vmatpush1.msra.mxu0 0.0
    %416 = vmatprep.subr.mxu0 0.0
    %417 = vmatpush1.msra.mxu0 0.0
    %418 = vmatprep.subr.mxu0 0.0
    %419 = vmatpush1.msra.mxu0 0.0
    %420 = vmatprep.subr.mxu0 0.0
    %421 = vmatpush1.msra.mxu0 0.0
    %422 = vmatprep.subr.mxu0 0.0
    %423 = vmatpush1.msra.mxu0 0.0
    %424 = vmatprep.subr.mxu0 0.0
    %425 = vmatpush1.msra.mxu0 0.0
    %426 = vmatprep.subr.mxu0 0.0
    %427 = vmatpush1.msra.mxu0 0.0
    %428 = vmatprep.subr.mxu0 0.0
    %429 = vmatpush1.msra.mxu0 0.0
    %430 = vmatprep.subr.mxu0 0.0
    %431 = vmatpush1.msra.mxu0 0.0
    %432 = vmatprep.subr.mxu0 0.0
    %433 = vmatpush1.msra.mxu0 0.0
    %434 = vmatprep.subr.mxu0 0.0
    %435 = vmatpush1.msra.mxu0 0.0
    %436 = vmatprep.subr.mxu0 0.0
    %437 = vmatpush1.msra.mxu0 0.0
    %438 = vmatprep.subr.mxu0 0.0
    %439 = vmatpush1.msra.mxu0 0.0
    %440 = vmatprep.subr.mxu0 0.0
    %441 = vmatpush1.msra.mxu0 0.0
    %442 = vmatprep.mubr.f32.mxu0 0.0
    %443 = vmatmul.mubr.f32.gmra.mrb[0].mxu0 %v376
    %v444 = vpop.f32.mrb[0].mxu0
    %v445 = vadd.f32 %v373, %v444
    %v446 = vpop.f32.mrb[0].mxu0
    %447 = vdwg.mxu0
    %v448 = vld [vmem:[%s8] sm:$0x1]
    %v450 = vlaneseq
    %v451 = vshrl.u32 %v450, 7
    %v452 = vsub.s32 0, %v451
    %v453 = vrot.slane %v448, %v452
    %v455 = vadd.f32 %v445, %v453
    %v456 = vtanh.pop %v455
    %v457 = vxor.u32 %v455, 2147483648
    %v458 = vmul.f32 %v457, 1.442695
    %v459 = vpow.pop %v458
    %v460 = vadd.f32 %v459, 1.0
    %v461 = vrcp.pop %v460
    %v462 = vmul.f32 1.0, %v461
    %v463 = vsel %vm251, %v456, %v462
    %465 = vrot.lane.b32.xlu0 %v294, 32
    %v466 = vpop.permute.xlu0 %465
    %v468 = vmul.f32 %v463, %v466
    %470 = vrot.lane.b32.xlu0 %v463, 64
    %v471 = vpop.permute.xlu0 %470
    %v473 = vmul.f32 %v463, %v471
    %475 = vrot.lane.b32.xlu0 %v473, 32
    %v476 = vpop.permute.xlu0 %475
    %v478 = vadd.f32 %v468, %v476
    %v479 = vtanh.pop %v478
    %481 = vrot.lane.b32.xlu0 %v479, 64
    %v482 = vpop.permute.xlu0 %481
    %v484 = vmul.f32 %v463, %v482
    %486 = vrot.lane.b32.xlu0 %v484, 32
    %v487 = vpop.permute.xlu0 %486
    %s489 = scalar_lea.vmem %s12, 8
    %490 = vst.msk [vmem:[%s489] sm:$0xff] %vm91, %v487
    %492 = vrot.lane.b32.xlu0 %v478, 96
    %v493 = vpop.permute.xlu0 %492
    %s495 = scalar_lea.vmem %s13, 8
    %496 = vst.msk [vmem:[%s495] sm:$0xff] %vm91, %v493
    %v497 = vld [vmem:[%s9] sm:$0x1]
    %v499 = vlaneseq
    %v500 = vshrl.u32 %v499, 7
    %v501 = vsub.s32 0, %v500
    %v502 = vrot.slane %v497, %v501
    %503 = vrot.lane.b32.xlu0 %v502, 96
    %v504 = vpop.permute.xlu0 %503
    %v506 = vmul.f32 %v484, %v504
    %508 = vrot.lane.b32.xlu0 %v506, 32
    %v509 = vpop.permute.xlu0 %508
    %v511 = vsel %vm91, %v509, 0.0
    %512 = vadd.xlane.f32.xlu0 %v511
    %v513 = vpop.xlane.xlu0 %512
    %v514 = vld [vmem:[#allocation2] sm:$0x1]
    %v516 = vlaneseq
    %v517 = vshrl.u32 %v516, 7
    %v518 = vsub.s32 0, %v517
    %v519 = vrot.slane %v514, %v518
    %v521 = vadd.f32 %v513, %v519
    %vm522 = vcmask 7168
    %523 = vst.msk [vmem:[%s11] sm:$0xff] %vm522, %v521
    // Predicated region
    $region58: #{prediction_lstm_forward.1} parent=1 // pred_check
      _
    $region59: #{prediction_lstm_forward.1} parent=1 // pred_check_branch
      %525 = sbr.rel (0) target = $region61
    $region60: #{prediction_lstm_forward.1} parent=1 // pred_region
      _
    $region61: #{prediction_lstm_forward.1} parent=1 // pred_fallthru
      _
    // Predicated region
    $region62: #{prediction_lstm_forward.1} parent=1 // pred_check
      _
    $region63: #{prediction_lstm_forward.1} parent=1 // pred_check_branch
      %527 = sbr.rel (0) target = $region65
    $region64: #{prediction_lstm_forward.1} parent=1 // pred_region
      _
    $region65: #{prediction_lstm_forward.1} parent=1 // pred_fallthru
      _
    // Predicated region
    $region66: #{prediction_lstm_forward.1} parent=1 // pred_check
      _
    $region67: #{prediction_lstm_forward.1} parent=1 // pred_check_branch
      %529 = sbr.rel (0) target = $region69
    $region68: #{prediction_lstm_forward.1} parent=1 // pred_region
      _
    $region69: #{prediction_lstm_forward.1} parent=1 // pred_fallthru
      _
    // Predicated region
    $region70: #{prediction_lstm_forward.1} parent=1 // pred_check
      _
    $region71: #{prediction_lstm_forward.1} parent=1 // pred_check_branch
      %531 = sbr.rel (0) target = $region73
    $region72: #{prediction_lstm_forward.1} parent=1 // pred_region
      _
    $region73: #{prediction_lstm_forward.1} parent=1 // pred_fallthru
      _
    // Predicated region
    $region74: #{prediction_lstm_forward.1} parent=1 // pred_check
      _
    $region75: #{prediction_lstm_forward.1} parent=1 // pred_check_branch
      %533 = sbr.rel (0) target = $region77
    $region76: #{prediction_lstm_forward.1} parent=1 // pred_region
      _
    $region77: #{prediction_lstm_forward.1} parent=1 // pred_fallthru
      _
    // Predicated region
    $region78: #{prediction_lstm_forward.1} parent=1 // pred_check
      _
    $region79: #{prediction_lstm_forward.1} parent=1 // pred_check_branch
      %535 = sbr.rel (0) target = $region81
    $region80: #{prediction_lstm_forward.1} parent=1 // pred_region
      _
    $region81: #{prediction_lstm_forward.1} parent=1 // pred_fallthru
      _
    %536 = vsyncpa [#allocation4], 1
    %537 = vsyncpa [#allocation6], 1

</llo_original>
